<compile_context>
chip_gen: v5e
topology: v5e:2x2
jax: 0.10.0
libtpu: 0.0.40
codegen_flags: <defaults>
</compile_context>

<pallas_src>
import functools

import jax
import jax.numpy as jnp
from jax import lax
from jax.experimental import pallas as pl
from jax.experimental.pallas import tpu as pltpu


def _round_up(x, m):
    return ((x + m - 1) // m) * m


def _self_output_kernel(x_ref, res_ref, w_ref, p_ref, out_ref, *, eps):
    # --- dense: x @ W^T (bf16 MXU inputs, f32 accumulation) ----------------
    # In-kernel bf16 casts are cheap VPU work hidden under the tile DMA; the
    # weight keeps its [H_out, H_in] layout (MXU takes a transposed RHS).
    x = x_ref[...].astype(jnp.bfloat16)
    w = w_ref[...].astype(jnp.bfloat16)
    h = lax.dot_general(x, w, (((1,), (1,)), ((), ())),
                        preferred_element_type=jnp.float32)

    p = p_ref[...].astype(jnp.float32)           # (3, H): [bias; gamma; beta]
    h = h + p[0:1, :]                            # dense bias, (1, H) broadcast

    # --- dropout ------------------------------------------------------------
    # TODO(synk): nn.Dropout is identity at inference; training-mode random
    # masking is intentionally not implemented here.

    # --- residual add (f32), residual streamed in its native dtype ----------
    h = h + res_ref[...].astype(jnp.float32)

    # --- LayerNorm (biased variance, eps inside sqrt), single sweep in f32 --
    hdim = h.shape[-1]
    s1 = jnp.sum(h, axis=-1, keepdims=True)
    s2 = jnp.sum(h * h, axis=-1, keepdims=True)
    mean = s1 * (1.0 / hdim)
    var = jnp.maximum(s2 * (1.0 / hdim) - mean * mean, 0.0)
    inv = lax.rsqrt(var + eps)                   # EUP slot, ~free
    out = p[1:2, :] * ((h - mean) * inv) + p[2:3, :]
    out_ref[...] = out.astype(out_ref.dtype)


def _vmem_bytes(rt, H, x_bytes, r_bytes, o_bytes, w_bytes):
    # Double-buffered streaming tiles + single-buffered resident blocks +
    # a few f32 [rt, H] intermediates.
    return (2 * rt * H * (x_bytes + r_bytes + o_bytes)
            + H * H * w_bytes + 3 * H * 4
            + 3 * rt * H * 4)


def bert_self_output(hidden_states, input_tensor, params, *,
                     eps=1e-12, row_tile=512, out_dtype=None):
    """hidden_states, input_tensor: [B, S, H]. Returns [B, S, H].

    Implements the default norm=True branch of BertSelfOutput.
    """
    B, S, H = hidden_states.shape
    assert input_tensor.shape == (B, S, H)
    N = B * S
    if out_dtype is None:
        # Set out_dtype=jnp.bfloat16 if downstream accepts it (halves the
        # output store stream on this mem-bound kernel).
        out_dtype = hidden_states.dtype

    x2d = hidden_states.reshape(N, H)            # native dtype, no pad/convert
    r2d = input_tensor.reshape(N, H)             # native dtype
    w = params["dense_weight"]                   # [H_out, H_in], no transpose
    # Pack bias / gamma / beta into a single (3, H) f32 resident operand.
    pvec = jnp.stack([params["dense_bias"],
                      params["ln_weight"],
                      params["ln_bias"]]).astype(jnp.float32)

    x_bytes = jnp.dtype(x2d.dtype).itemsize
    r_bytes = jnp.dtype(r2d.dtype).itemsize
    w_bytes = jnp.dtype(w.dtype).itemsize
    o_bytes = jnp.dtype(out_dtype).itemsize

    # Row tile: multiple of 16 (bf16 packs two rows per sublane), shrunk for
    # tiny inputs, and auto-shrunk against a VMEM budget that fits v7x's
    # 64 MiB physical VMEM (v5e/v6e have more headroom).
    rt = min(row_tile, _round_up(N, 16))
    vmem_budget = 48 * 1024 * 1024
    while rt > 64 and _vmem_bytes(rt, H, x_bytes, r_bytes, o_bytes,
                                  w_bytes) > vmem_budget:
        rt //= 2
    grid = (pl.cdiv(N, rt),)   # ragged last block is clipped/masked by Pallas

    compiler_kwargs = dict(dimension_semantics=("parallel",))
    vmem_est = _vmem_bytes(rt, H, x_bytes, r_bytes, o_bytes, w_bytes)
    if vmem_est > 32 * 1024 * 1024:
        # Raise the scoped VMEM limit above the default only when needed;
        # 56 MiB stays under v7x's 64 MiB physical VMEM.
        compiler_kwargs["vmem_limit_bytes"] = 56 * 1024 * 1024

    cost = pl.CostEstimate(
        flops=2 * N * H * H,
        transcendentals=N,
        bytes_accessed=(N * H * (x_bytes + r_bytes + o_bytes)
                        + H * H * w_bytes + 3 * H * 4))

    resident = pl.Buffered(1)   # constant-index blocks: single buffer

    out = pl.pallas_call(
        functools.partial(_self_output_kernel, eps=eps),
        out_shape=jax.ShapeDtypeStruct((N, H), out_dtype),
        grid_spec=pltpu.PrefetchScalarGridSpec(
            num_scalar_prefetch=0,
            grid=grid,
            in_specs=[
                pl.BlockSpec((rt, H), lambda i: (i, 0)),   # x tile (native)
                pl.BlockSpec((rt, H), lambda i: (i, 0)),   # residual (native)
                pl.BlockSpec((H, H), lambda i: (0, 0),
                             pipeline_mode=resident),      # W (resident)
                pl.BlockSpec((3, H), lambda i: (0, 0),
                             pipeline_mode=resident),      # bias/gamma/beta
            ],
            out_specs=pl.BlockSpec((rt, H), lambda i: (i, 0)),
        ),
        compiler_params=pltpu.CompilerParams(**compiler_kwargs),
        cost_estimate=cost,
    )(x2d, r2d, w, pvec)

    return out.reshape(B, S, H)


def _reference(hidden_states, input_tensor, params, eps=1e-12):
    """Pure-JAX f32 reference mirroring the PyTorch forward exactly."""
    x = hidden_states.astype(jnp.float32)
    h = x @ params["dense_weight"].T + params["dense_bias"]
    h = h + input_tensor.astype(jnp.float32)
    mean = h.mean(-1, keepdims=True)
    var = ((h - mean) ** 2).mean(-1, keepdims=True)
    normed = (h - mean) / jnp.sqrt(var + eps)
    return params["ln_weight"] * normed + params["ln_bias"]


if __name__ == "__main__":
    # Small, module-consistent shapes.
    batch, seq, hidden = 2, 8, 32

    key = jax.random.PRNGKey(0)
    k_x, k_r, k_w, k_b, k_g, k_bt = jax.random.split(key, 6)

    hidden_states = jax.random.normal(k_x, (batch, seq, hidden), jnp.float32)
    input_tensor = jax.random.normal(k_r, (batch, seq, hidden), jnp.float32)

    params = {
        # BertSelfOutput.dense : Linear(hidden, hidden)  (weight is [out, in])
        "dense_weight": jax.random.normal(k_w, (hidden, hidden), jnp.float32) * 0.05,
        "dense_bias": jax.random.normal(k_b, (hidden,), jnp.float32) * 0.05,
        # BertLayerNorm parameters (randomized to exercise scale/shift paths)
        "ln_weight": 1.0 + 0.1 * jax.random.normal(k_g, (hidden,), jnp.float32),
        "ln_bias": 0.1 * jax.random.normal(k_bt, (hidden,), jnp.float32),
    }

    out = bert_self_output(hidden_states, input_tensor, params)
    out = jax.block_until_ready(out)

    ref = _reference(hidden_states, input_tensor, params)
    assert out.shape == (batch, seq, hidden)
    # bf16 matmul inputs -> looser tolerance than pure-f32 path.
    assert jnp.allclose(out, ref, atol=2e-2, rtol=2e-2), "mismatch vs reference"

    print("KERNEL_OK")
</pallas_src>

<mosaic_0001>
module attributes {stable_mosaic.version = 11 : i64} {
  func.func @_self_output_kernel(%arg0: i32, %arg1: memref<16x32xf32, #tpu.memory_space<vmem>>, %arg2: memref<16x32xf32, #tpu.memory_space<vmem>>, %arg3: memref<32x32xf32, #tpu.memory_space<vmem>>, %arg4: memref<3x32xf32, #tpu.memory_space<vmem>>, %arg5: memref<16x32xf32, #tpu.memory_space<vmem>>) attributes {dimension_semantics = [#tpu.dimension_semantics<parallel>], iteration_bounds = array<i64: 1>, scalar_prefetch = 0 : i64, scratch_operands = 0 : i64, tpu.core_type = #tpu.core_type<tc>, window_params = [{transform_indices = @transform_0, window_bounds = array<i64: 16, 32>}, {transform_indices = @transform_1, window_bounds = array<i64: 16, 32>}, {pipeline_mode = #tpu.pipeline_mode<synchronous>, transform_indices = @transform_2, window_bounds = array<i64: 32, 32>}, {pipeline_mode = #tpu.pipeline_mode<synchronous>, transform_indices = @transform_3, window_bounds = array<i64: 3, 32>}, {transform_indices = @transform_4, window_bounds = array<i64: 16, 32>}]} {
    %c0 = arith.constant 0 : index
    %c0_0 = arith.constant 0 : index
    %0 = vector.load %arg1[%c0, %c0_0] : memref<16x32xf32, #tpu.memory_space<vmem>>, vector<16x32xf32>
    %1 = arith.truncf %0 : vector<16x32xf32> to vector<16x32xbf16>
    %c0_1 = arith.constant 0 : index
    %c0_2 = arith.constant 0 : index
    %2 = vector.load %arg3[%c0_1, %c0_2] : memref<32x32xf32, #tpu.memory_space<vmem>>, vector<32x32xf32>
    %3 = arith.truncf %2 : vector<32x32xf32> to vector<32x32xbf16>
    %cst = arith.constant dense<0.000000e+00> : vector<16x32xf32>
    %4 = tpu.matmul %1, %3, %cst {dimension_numbers = #tpu.dot_dimension_numbers<[1], [1], [0], [0], [0, 0, 1, 0], [], []>} : vector<16x32xbf16>, vector<32x32xbf16>, vector<16x32xf32> -> vector<16x32xf32>
    %c0_3 = arith.constant 0 : index
    %c0_4 = arith.constant 0 : index
    %5 = vector.load %arg4[%c0_3, %c0_4] : memref<3x32xf32, #tpu.memory_space<vmem>>, vector<3x32xf32>
    %6 = vector.extract_strided_slice %5 {offsets = [0, 0], sizes = [1, 32], strides = [1, 1]} : vector<3x32xf32> to vector<1x32xf32>
    %7 = vector.broadcast %6 : vector<1x32xf32> to vector<16x32xf32>
    %8 = arith.addf %4, %7 : vector<16x32xf32>
    %c0_5 = arith.constant 0 : index
    %c0_6 = arith.constant 0 : index
    %9 = vector.load %arg2[%c0_5, %c0_6] : memref<16x32xf32, #tpu.memory_space<vmem>>, vector<16x32xf32>
    %10 = arith.addf %8, %9 : vector<16x32xf32>
    %cst_7 = arith.constant dense<0.000000e+00> : vector<16xf32>
    %11 = vector.multi_reduction <add>, %10, %cst_7 [1] : vector<16x32xf32> to vector<16xf32>
    %12 = vector.shape_cast %11 : vector<16xf32> to vector<16x1xf32>
    %13 = arith.mulf %10, %10 : vector<16x32xf32>
    %cst_8 = arith.constant dense<0.000000e+00> : vector<16xf32>
    %14 = vector.multi_reduction <add>, %13, %cst_8 [1] : vector<16x32xf32> to vector<16xf32>
    %15 = vector.shape_cast %14 : vector<16xf32> to vector<16x1xf32>
    %cst_9 = arith.constant 3.125000e-02 : f32
    %16 = vector.broadcast %cst_9 : f32 to vector<16x1xf32>
    %17 = arith.mulf %12, %16 : vector<16x1xf32>
    %cst_10 = arith.constant 3.125000e-02 : f32
    %18 = vector.broadcast %cst_10 : f32 to vector<16x1xf32>
    %19 = arith.mulf %15, %18 : vector<16x1xf32>
    %20 = arith.mulf %17, %17 : vector<16x1xf32>
    %21 = arith.subf %19, %20 : vector<16x1xf32>
    %cst_11 = arith.constant 0.000000e+00 : f32
    %22 = vector.broadcast %cst_11 : f32 to vector<16x1xf32>
    %23 = arith.maximumf %21, %22 : vector<16x1xf32>
    %cst_12 = arith.constant 9.99999996E-13 : f32
    %24 = vector.broadcast %cst_12 : f32 to vector<16x1xf32>
    %25 = arith.addf %23, %24 : vector<16x1xf32>
    %26 = math.rsqrt %25 : vector<16x1xf32>
    %27 = vector.extract_strided_slice %5 {offsets = [1, 0], sizes = [1, 32], strides = [1, 1]} : vector<3x32xf32> to vector<1x32xf32>
    %28 = vector.broadcast %17 : vector<16x1xf32> to vector<16x32xf32>
    %29 = arith.subf %10, %28 : vector<16x32xf32>
    %30 = vector.broadcast %26 : vector<16x1xf32> to vector<16x32xf32>
    %31 = arith.mulf %29, %30 : vector<16x32xf32>
    %32 = vector.broadcast %27 : vector<1x32xf32> to vector<16x32xf32>
    %33 = arith.mulf %32, %31 : vector<16x32xf32>
    %34 = vector.extract_strided_slice %5 {offsets = [2, 0], sizes = [1, 32], strides = [1, 1]} : vector<3x32xf32> to vector<1x32xf32>
    %35 = vector.broadcast %34 : vector<1x32xf32> to vector<16x32xf32>
    %36 = arith.addf %33, %35 : vector<16x32xf32>
    %c0_13 = arith.constant 0 : index
    %c0_14 = arith.constant 0 : index
    %37 = vector.load %arg5[%c0_13, %c0_14] : memref<16x32xf32, #tpu.memory_space<vmem>>, vector<16x32xf32>
    tpu.vector_store %arg5[%c0_13, %c0_14], %36 {strides = array<i32>} : memref<16x32xf32, #tpu.memory_space<vmem>>, vector<16x32xf32>,
    return
  }
  func.func @transform_0(%arg0: i32) -> (i32, i32) {
    %c0_i32 = arith.constant 0 : i32
    %c0_i32_0 = arith.constant 0 : i32
    return %arg0, %c0_i32 : i32, i32
  }
  func.func @transform_1(%arg0: i32) -> (i32, i32) {
    %c0_i32 = arith.constant 0 : i32
    %c0_i32_0 = arith.constant 0 : i32
    return %arg0, %c0_i32 : i32, i32
  }
  func.func @transform_2(%arg0: i32) -> (i32, i32) {
    %c0_i32 = arith.constant 0 : i32
    %c0_i32_0 = arith.constant 0 : i32
    %c0_i32_1 = arith.constant 0 : i32
    return %c0_i32, %c0_i32_0 : i32, i32
  }
  func.func @transform_3(%arg0: i32) -> (i32, i32) {
    %c0_i32 = arith.constant 0 : i32
    %c0_i32_0 = arith.constant 0 : i32
    %c0_i32_1 = arith.constant 0 : i32
    return %c0_i32, %c0_i32_0 : i32, i32
  }
  func.func @transform_4(%arg0: i32) -> (i32, i32) {
    %c0_i32 = arith.constant 0 : i32
    %c0_i32_0 = arith.constant 0 : i32
    return %arg0, %c0_i32 : i32, i32
  }
}

</mosaic_0001>

<llo_original>
// kernel: tpu_custom_call.1
$region0: #{tpu_custom_call.1}
  #allocation0 [shape = 'u32[]', space=smem, size = 0x4, offset = 0x4, fixed_abs, tag = 'smem constant byte address 0x4 - core index']
  #allocation1 [shape = 'u32[72,128]{1,0:T(1,128)}', space=vmem, size = 0x9000, scoped, tag = 'internal scratch']
  %s0 = inlined_call_operand.hbm [shape: f32[16,32], index: 0, kind: input, shape index: {}]
  %s1 = inlined_call_operand.hbm [shape: f32[16,32], index: 1, kind: input, shape index: {}]
  %s2 = inlined_call_operand.hbm [shape: f32[32,32], index: 2, kind: input, shape index: {}]
  %s3 = inlined_call_operand.hbm [shape: f32[3,32], index: 3, kind: input, shape index: {}]
  %s4 = inlined_call_operand.hbm [shape: f32[16,32], index: 4, kind: output, shape index: {}]
  %s5 = sld [smem:[#allocation0]]
  $region42: #{tpu_custom_call.1} parent=0
    _
  %s7 = ssub.s32 1, %s5
  %s8 = scalar_select 0, %s7, %s5
  $region1: #{tpu_custom_call.1} parent=0
    #allocation2 [shape = 'u8[8192]{0}', space=vmem, size = 0x2000, scoped, tag = 'input window, operand 0, single buffered']
    #allocation3 [shape = 's32[1]{0}', space=sflag, size = 0x4, scoped, tag = 'scoped memory for tpu_custom_call.1']
    #allocation4 [shape = 's32[1]{0}', space=sflag, size = 0x4, scoped, tag = 'scoped memory for tpu_custom_call.1']
    #allocation5 [shape = 'u8[8192]{0}', space=vmem, size = 0x2000, scoped, tag = 'input window, operand 1, single buffered']
    #allocation6 [shape = 's32[1]{0}', space=sflag, size = 0x4, scoped, tag = 'scoped memory for tpu_custom_call.1']
    #allocation7 [shape = 'u8[16384]{0}', space=vmem, size = 0x4000, scoped, tag = 'input window, operand 2, single buffered']
    #allocation8 [shape = 'u8[2048]{0}', space=vmem, size = 0x800, scoped, tag = 'input window, operand 3, single buffered']
    #allocation9 [shape = 's32[1]{0}', space=sflag, size = 0x4, scoped, tag = 'scoped memory for tpu_custom_call.1']
    #allocation10 [shape = 'u8[8192]{0}', space=vmem, size = 0x2000, scoped, tag = 'output window, operand 0, single buffered']
    %9 = vsyncpa [#allocation3], 0
    %10 = vsyncpa [#allocation6], 0
    %11 = vsyncpa [#allocation9], 0
    %12 = vsyncpa [#allocation4], 0
    // Predicated region
    $region2: #{tpu_custom_call.1} parent=1 // pred_check
      _
    $region3: #{tpu_custom_call.1} parent=1 // pred_check_branch
      %14 = sbr.rel (0) target = $region5
    $region4: #{tpu_custom_call.1} parent=1 // pred_region
      %16 = vsyncadd [#allocation3], 0
      %s17 = sshll.u32 %s0, 4
      %s18 = int_to_ptr.hbm [resolvable:$true] %s17
      %s19 = sshll.u32 [#allocation2], 4
      %s20 = int_to_ptr.vmem [resolvable:$true] %s19
      %25 = dma.hbm_to_vmem [thread:$0]  %s18, 256, %s20, [#allocation3], 128, 128, 8
    $region5: #{tpu_custom_call.1} parent=1 // pred_fallthru
      _
    // Predicated region
    $region6: #{tpu_custom_call.1} parent=1 // pred_check
      _
    $region7: #{tpu_custom_call.1} parent=1 // pred_check_branch
      %27 = sbr.rel (0) target = $region9
    $region8: #{tpu_custom_call.1} parent=1 // pred_region
      %29 = vsyncadd [#allocation6], 0
      %s30 = sshll.u32 %s1, 4
      %s31 = int_to_ptr.hbm [resolvable:$true] %s30
      %s32 = sshll.u32 [#allocation5], 4
      %s33 = int_to_ptr.vmem [resolvable:$true] %s32
      %38 = dma.hbm_to_vmem [thread:$0]  %s31, 256, %s33, [#allocation6], 128, 128, 8
    $region9: #{tpu_custom_call.1} parent=1 // pred_fallthru
      _
    // Predicated region
    $region10: #{tpu_custom_call.1} parent=1 // pred_check
      _
    $region11: #{tpu_custom_call.1} parent=1 // pred_check_branch
      %40 = sbr.rel (0) target = $region13
    $region12: #{tpu_custom_call.1} parent=1 // pred_region
      %42 = vsyncadd [#allocation6], 0
      %s43 = sshll.u32 %s2, 4
      %s44 = int_to_ptr.hbm [resolvable:$true] %s43
      %s45 = sshll.u32 [#allocation7], 4
      %s46 = int_to_ptr.vmem [resolvable:$true] %s45
      %51 = dma.hbm_to_vmem [thread:$0]  %s44, 512, %s46, [#allocation6], 128, 128, 8
    $region13: #{tpu_custom_call.1} parent=1 // pred_fallthru
      _
    // Predicated region
    $region14: #{tpu_custom_call.1} parent=1 // pred_check
      _
    $region15: #{tpu_custom_call.1} parent=1 // pred_check_branch
      %53 = sbr.rel (0) target = $region17
    $region16: #{tpu_custom_call.1} parent=1 // pred_region
      %55 = vsyncadd [#allocation9], 0
      %s57 = sshll.u32 %s3, 4
      %s58 = int_to_ptr.hbm [resolvable:$true] %s57
      %s59 = sshll.u32 [#allocation8], 4
      %s60 = int_to_ptr.vmem [resolvable:$true] %s59
      %62 = dma.hbm_to_vmem [thread:$0]  %s58, 64, %s60, [#allocation9]
    $region17: #{tpu_custom_call.1} parent=1 // pred_fallthru
      _
    // Predicated region
    $region18: #{tpu_custom_call.1} parent=1 // pred_check
      _
    $region19: #{tpu_custom_call.1} parent=1 // pred_check_branch
      %64 = sbr.rel (0) target = $region21
    $region20: #{tpu_custom_call.1} parent=1 // pred_region
      %66 = dma.done [#allocation3], 256
    $region21: #{tpu_custom_call.1} parent=1 // pred_fallthru
      _
    // Predicated region
    $region22: #{tpu_custom_call.1} parent=1 // pred_check
      _
    $region23: #{tpu_custom_call.1} parent=1 // pred_check_branch
      %68 = sbr.rel (0) target = $region25
    $region24: #{tpu_custom_call.1} parent=1 // pred_region
      %70 = dma.done [#allocation6], 256
    $region25: #{tpu_custom_call.1} parent=1 // pred_fallthru
      _
    // Predicated region
    $region26: #{tpu_custom_call.1} parent=1 // pred_check
      _
    $region27: #{tpu_custom_call.1} parent=1 // pred_check_branch
      %72 = sbr.rel (0) target = $region29
    $region28: #{tpu_custom_call.1} parent=1 // pred_region
      %74 = dma.done [#allocation6], 512
    $region29: #{tpu_custom_call.1} parent=1 // pred_fallthru
      _
    // Predicated region
    $region30: #{tpu_custom_call.1} parent=1 // pred_check
      _
    $region31: #{tpu_custom_call.1} parent=1 // pred_check_branch
      %76 = sbr.rel (0) target = $region33
    $region32: #{tpu_custom_call.1} parent=1 // pred_region
      %78 = dma.done [#allocation9], 64
    $region33: #{tpu_custom_call.1} parent=1 // pred_fallthru
      _
    %v80 = vld [vmem:[#allocation2] sm:$0xff]
    %v81 = vld [vmem:[#allocation2 + $0x8] sm:$0xff]
    %v82 = vpack.c.bf16 %v81, %v80
    %v83 = vld [vmem:[#allocation7] sm:$0xff]
    %v84 = vld [vmem:[#allocation7 + $0x8] sm:$0xff]
    %v85 = vld [vmem:[#allocation7 + $0x10] sm:$0xff]
    %v86 = vld [vmem:[#allocation7 + $0x18] sm:$0xff]
    %v87 = vpack.c.bf16 %v84, %v83
    %v88 = vpack.c.bf16 %v86, %v85
    %v89 = vld [vmem:[#allocation8] sm:$0x7]
    %v90 = vperm.slane %v89, 0
    %vm91 = vcmask 261120
    %v93 = vsel %vm91, %v82, 0
    %v96 = vsel %vm91, %v87, 0
    %v99 = vsel %vm91, %v88, 0
    %101 = vmatpush.bf16.xpose.msra.mxu0 0
    %102 = vmatpush.bf16.xpose.msra.mxu0 0
    %103 = vmatpush.bf16.xpose.msra.mxu0 0
    %104 = vmatpush.bf16.xpose.msra.mxu0 0
    %105 = vmatpush.bf16.xpose.msra.mxu0 0
    %106 = vmatpush.bf16.xpose.msra.mxu0 0
    %107 = vmatpush.bf16.xpose.msra.mxu0 %v99
    %108 = vmatpush.bf16.xpose.msra.mxu0 %v96
    %109 = vmatmul.bf16.gmra.mxu0 %v93
    %v110 = vpop.f32.mrf.mxu0
    %v111 = vadd.f32 %v90, %v110
    %v112 = vpop.f32.mrf.mxu0
    %v113 = vadd.f32 %v90, %v112
    %114 = vdwg.mxu0
    %v115 = vld [vmem:[#allocation5] sm:$0xff]
    %v116 = vld [vmem:[#allocation5 + $0x8] sm:$0xff]
    %v117 = vadd.f32 %v111, %v115
    %v118 = vadd.f32 %v113, %v116
    %v119 = vsel %vm91, %v117, 0.0
    %120 = vadd.xlane.f32.xlu0 %v119
    %v121 = vpop.xlane.xlu0 %120
    %v122 = vsel %vm91, %v118, 0.0
    %123 = vadd.xlane.f32.xlu0 %v122
    %v124 = vpop.xlane.xlu0 %123
    %v125 = vmul.f32 %v117, %v117
    %v126 = vmul.f32 %v118, %v118
    %v127 = vsel %vm91, %v125, 0.0
    %128 = vadd.xlane.f32.xlu0 %v127
    %v129 = vpop.xlane.xlu0 %128
    %v130 = vsel %vm91, %v126, 0.0
    %131 = vadd.xlane.f32.xlu0 %v130
    %v132 = vpop.xlane.xlu0 %131
    %v133 = vmul.f32 %v121, 0.03125
    %v134 = vmul.f32 %v124, 0.03125
    %v135 = vmul.f32 %v129, 0.03125
    %v136 = vmul.f32 %v132, 0.03125
    %v137 = vmul.f32 %v133, %v133
    %v138 = vmul.f32 %v134, %v134
    %v139 = vsub.f32 %v135, %v137
    %v140 = vsub.f32 %v136, %v138
    %v141 = vmax.f32 %v139, 0.0
    %v142 = vmax.f32 %v140, 0.0
    %v143 = vadd.f32 %v141, 1e-12
    %v144 = vadd.f32 %v142, 1e-12
    %v145 = vrsqrt.pop %v143
    %v146 = vmul.f32 %v145, %v143
    %v147 = vmul.f32 %v146, %v145
    %v148 = vmul.f32 0.5, %v147
    %v149 = vsub.f32 1.5, %v148
    %v150 = vmul.f32 %v145, %v149
    %vm151 = vweird.f32 %v143
    %vm152 = vweird.f32 %v145
    %vm153 = vmor %vm151, %vm152
    %v154 = vsel %vm153, %v145, %v150
    %v155 = vrsqrt.pop %v144
    %v156 = vmul.f32 %v155, %v144
    %v157 = vmul.f32 %v156, %v155
    %v158 = vmul.f32 0.5, %v157
    %v159 = vsub.f32 1.5, %v158
    %v160 = vmul.f32 %v155, %v159
    %vm161 = vweird.f32 %v144
    %vm162 = vweird.f32 %v155
    %vm163 = vmor %vm161, %vm162
    %v164 = vsel %vm163, %v155, %v160
    %v165 = vsub.f32 %v117, %v133
    %v166 = vsub.f32 %v118, %v134
    %v167 = vmul.f32 %v165, %v154
    %v168 = vmul.f32 %v166, %v164
    %v169 = vperm.slane %v89, 1
    %v170 = vmul.f32 %v169, %v167
    %v171 = vmul.f32 %v169, %v168
    %v172 = vperm.slane %v89, 2
    %v173 = vadd.f32 %v170, %v172
    %v174 = vadd.f32 %v171, %v172
    %175 = vst.msk [vmem:[#allocation10] sm:$0xff] %vm91, %v173
    %176 = vst.msk [vmem:[#allocation10 + $0x8] sm:$0xff] %vm91, %v174
    // Predicated region
    $region34: #{tpu_custom_call.1} parent=1 // pred_check
      _
    $region35: #{tpu_custom_call.1} parent=1 // pred_check_branch
      %178 = sbr.rel (0) target = $region37
    $region36: #{tpu_custom_call.1} parent=1 // pred_region
      %180 = vsyncadd [#allocation4], 0
      %s181 = sshll.u32 [#allocation10], 4
      %s182 = int_to_ptr.vmem [resolvable:$true] %s181
      %s183 = sshll.u32 %s4, 4
      %s184 = int_to_ptr.hbm [resolvable:$true] %s183
      %189 = dma.vmem_to_hbm [thread:$0]  %s182, 256, %s184, [#allocation4], 128, 128, 8
    $region37: #{tpu_custom_call.1} parent=1 // pred_fallthru
      _
    // Predicated region
    $region38: #{tpu_custom_call.1} parent=1 // pred_check
      _
    $region39: #{tpu_custom_call.1} parent=1 // pred_check_branch
      %191 = sbr.rel (0) target = $region41
    $region40: #{tpu_custom_call.1} parent=1 // pred_region
      %193 = dma.done [#allocation4], 256
    $region41: #{tpu_custom_call.1} parent=1 // pred_fallthru
      _
    %194 = vsyncpa [#allocation3], 1
    %195 = vsyncpa [#allocation6], 1
    %196 = vsyncpa [#allocation9], 1
    %197 = vsyncpa [#allocation4], 1

</llo_original>
